<compile_context>
chip_gen: v5e
topology: v5e:2x2
jax: 0.10.0
libtpu: 0.0.40
codegen_flags: <defaults>
</compile_context>

<pallas_src>
import functools
import math

import jax
import jax.numpy as jnp
from jax.experimental import pallas as pl
from jax.experimental.pallas import tpu as pltpu


# ---------------------------------------------------------------------------
# VMEM / tile budgeting (generation-aware).
# ---------------------------------------------------------------------------
def _vmem_budget():
    """Returns (vmem_limit_bytes, max_tile_bytes_per_buffer)."""
    try:
        vmem = int(pltpu.get_tpu_info().vmem_capacity_bytes)
    except Exception:
        vmem = 64 * 1024 * 1024  # conservative (v7x per-TC VMEM)
    # Leave headroom for Mosaic internal scratch; never ask for more than the
    # chip has (v7x: 64 MiB physical -> 48 MiB limit; v5e/v6e: 128 -> 96 MiB).
    vmem_limit = max(32 * 1024 * 1024, min(vmem * 3 // 4, 96 * 1024 * 1024))
    # Double-buffered input + double-buffered output = 4 live buffers.
    max_tile = max(1 * 1024 * 1024, min(8 * 1024 * 1024, vmem_limit // 8))
    return vmem_limit, max_tile


# ---------------------------------------------------------------------------
# Kernels.
# ---------------------------------------------------------------------------
def _rescale_store(x, scale, offset, o_ref):
    """out = x * scale + offset, one FMA pass; keep sub-32-bit dtypes native."""
    if jnp.issubdtype(x.dtype, jnp.floating) and x.dtype.itemsize < 4:
        # bf16/f16: VPU handles these on v6e/v7x; avoids a full-tile f32 temp.
        o_ref[...] = (x * scale.astype(x.dtype) + offset.astype(x.dtype)).astype(o_ref.dtype)
    else:
        xf = x.astype(jnp.float32)
        o_ref[...] = (xf * scale + offset).astype(o_ref.dtype)


def _max_min_norm_kernel(x_ref, o_ref, *, minv, maxv, eps):
    """Fused path: full reduction axis in one block."""
    x = x_ref[...]
    # Min/max are exact in any float dtype; only (rows, 1) scalars go to f32.
    row_max = jnp.max(x, axis=-1, keepdims=True).astype(jnp.float32)
    row_min = jnp.min(x, axis=-1, keepdims=True).astype(jnp.float32)
    # Exact divide (tiny per-row column); denom >= eps > 0 so no inf/NaN for
    # constant rows.
    scale = (maxv - minv) / (row_max - row_min + eps)      # (rows, 1)
    offset = minv - row_min * scale                        # (rows, 1)
    _rescale_store(x, scale, offset, o_ref)


def _minmax_kernel(x_ref, min_ref, max_ref, *, lanes, lane_tile):
    """Wide-row fallback pass 1: lane-tiled per-row min/max reduction."""
    k = pl.program_id(1)
    x = x_ref[...].astype(jnp.float32)
    # Mask lanes past the true extent (last lane block may be padded).
    lane_idx = jax.lax.broadcasted_iota(jnp.int32, x.shape, 1) + k * lane_tile
    valid = lane_idx < lanes
    tile_min = jnp.min(jnp.where(valid, x, jnp.inf), axis=-1, keepdims=True)
    tile_max = jnp.max(jnp.where(valid, x, -jnp.inf), axis=-1, keepdims=True)

    @pl.when(k == 0)
    def _():
        min_ref[...] = tile_min
        max_ref[...] = tile_max

    @pl.when(k > 0)
    def _():
        min_ref[...] = jnp.minimum(min_ref[...], tile_min)
        max_ref[...] = jnp.maximum(max_ref[...], tile_max)


def _apply_norm_kernel(x_ref, min_ref, max_ref, o_ref, *, minv, maxv, eps):
    """Wide-row fallback pass 2: apply the per-row rescale, lane-tiled."""
    row_min = min_ref[...]
    row_max = max_ref[...]
    scale = (maxv - minv) / (row_max - row_min + eps)
    offset = minv - row_min * scale
    _rescale_store(x_ref[...], scale, offset, o_ref)


# ---------------------------------------------------------------------------
# Wrappers.
# ---------------------------------------------------------------------------
def _max_min_norm_wide(x2, minv, maxv, eps, itemsize, align,
                       max_tile_bytes, vmem_limit_bytes):
    """Two-pass reduce-then-normalize for rows too wide for one block."""
    rows, lanes = x2.shape
    row_tile = rows if rows <= align else align
    lane_tile = max(128, (max_tile_bytes // max(1, row_tile * itemsize)) // 128 * 128)
    lane_tile = min(lane_tile, pl.cdiv(lanes, 128) * 128)
    row_grid = pl.cdiv(rows, row_tile)
    lane_grid = pl.cdiv(lanes, lane_tile)

    mm_kernel = functools.partial(_minmax_kernel, lanes=lanes, lane_tile=lane_tile)
    row_min, row_max = pl.pallas_call(
        mm_kernel,
        out_shape=(jax.ShapeDtypeStruct((rows, 1), jnp.float32),
                   jax.ShapeDtypeStruct((rows, 1), jnp.float32)),
        grid=(row_grid, lane_grid),
        in_specs=[pl.BlockSpec((row_tile, lane_tile), lambda i, k: (i, k))],
        out_specs=(pl.BlockSpec((row_tile, 1), lambda i, k: (i, 0)),
                   pl.BlockSpec((row_tile, 1), lambda i, k: (i, 0))),
        compiler_params=pltpu.CompilerParams(
            dimension_semantics=("parallel", "arbitrary"),
            vmem_limit_bytes=vmem_limit_bytes),
        cost_estimate=pl.CostEstimate(flops=2 * rows * lanes, transcendentals=0,
                                      bytes_accessed=rows * lanes * itemsize),
    )(x2)

    ap_kernel = functools.partial(_apply_norm_kernel, minv=minv, maxv=maxv, eps=eps)
    out2 = pl.pallas_call(
        ap_kernel,
        out_shape=jax.ShapeDtypeStruct((rows, lanes), x2.dtype),
        grid=(row_grid, lane_grid),
        in_specs=[pl.BlockSpec((row_tile, lane_tile), lambda i, k: (i, k)),
                  pl.BlockSpec((row_tile, 1), lambda i, k: (i, 0)),
                  pl.BlockSpec((row_tile, 1), lambda i, k: (i, 0))],
        out_specs=pl.BlockSpec((row_tile, lane_tile), lambda i, k: (i, k)),
        compiler_params=pltpu.CompilerParams(
            dimension_semantics=("parallel", "parallel"),
            vmem_limit_bytes=vmem_limit_bytes),
        cost_estimate=pl.CostEstimate(flops=3 * rows * lanes, transcendentals=0,
                                      bytes_accessed=2 * rows * lanes * itemsize),
    )(x2, row_min, row_max)
    return out2


def max_min_norm(x: jax.Array, max_or_min: float = 1.0, min_or_max: float = 0.0,
                 eps: float = 1e-5, *, max_tile_bytes: int | None = None) -> jax.Array:
    """MaxMinNorm(max_or_min, min_or_max, eps).forward(x)."""
    # Clip/MaxMinNorm sorts the two endpoints into ascending (minv, maxv),
    # matching the PyTorch module (inverted ranges collapse the same way).
    minv, maxv = sorted((float(max_or_min), float(min_or_max)))
    eps = float(eps)
    orig_shape = x.shape

    # Per-sample normalization: batch dim stays, everything else is the
    # (lane-dense) reduction axis.
    if x.ndim == 0:
        rows, lanes = 1, 1
    elif x.ndim == 1:
        rows, lanes = 1, orig_shape[0]
    else:
        rows, lanes = orig_shape[0], math.prod(orig_shape[1:])
    x2 = x.reshape(rows, lanes)

    itemsize = jnp.dtype(x.dtype).itemsize
    # Dtype-aware sublane alignment: 8 for f32, 16 for bf16/f16, 32 for int8.
    align = max(8, 32 // max(1, itemsize))

    vmem_limit_bytes, default_tile = _vmem_budget()
    if max_tile_bytes is None:
        max_tile_bytes = default_tile

    rows_per_tile_mem = max_tile_bytes // max(1, lanes * itemsize)

    if rows_per_tile_mem < min(align, rows):
        # Even one sublane-aligned row block would exceed the VMEM budget:
        # lane-tiled two-pass reduce-then-normalize instead of OOMing.
        out2 = _max_min_norm_wide(x2, minv, maxv, eps, itemsize, align,
                                  max_tile_bytes, vmem_limit_bytes)
        return out2.reshape(orig_shape)

    # --- Fused single-pass path: full reduction axis per block. ---
    # Target >= ~8 grid programs when rows permit: keeps DMA/compute
    # software-pipelining alive and gives both v7x TensorCores work.
    min_programs = 8
    row_tile = min(rows_per_tile_mem, pl.cdiv(rows, min_programs))
    row_tile = max(align, (row_tile // align) * align)     # sublane-aligned
    if row_tile >= rows:
        row_tile = rows                                    # full-dim block
    grid = (pl.cdiv(rows, row_tile),)

    kernel = functools.partial(_max_min_norm_kernel, minv=minv, maxv=maxv, eps=eps)
    out2 = pl.pallas_call(
        kernel,
        out_shape=jax.ShapeDtypeStruct((rows, lanes), x.dtype),
        grid=grid,
        in_specs=[pl.BlockSpec((row_tile, lanes), lambda i: (i, 0))],
        out_specs=pl.BlockSpec((row_tile, lanes), lambda i: (i, 0)),
        compiler_params=pltpu.CompilerParams(
            dimension_semantics=("parallel",),   # independent rows -> both TCs
            vmem_limit_bytes=vmem_limit_bytes),
        cost_estimate=pl.CostEstimate(flops=5 * rows * lanes, transcendentals=0,
                                      bytes_accessed=2 * rows * lanes * itemsize),
    )(x2)
    return out2.reshape(orig_shape)


if __name__ == "__main__":
    eps = 1e-5

    def ref_fn(x, maxv=1.0, minv=0.0, eps=1e-5):
        flat = x.reshape(x.shape[0], -1).astype(jnp.float32)
        fmin = flat.min(axis=1, keepdims=True)
        fmax = flat.max(axis=1, keepdims=True)
        out = ((flat - fmin) / (fmax - fmin + eps)) * (maxv - minv) + minv
        return out.reshape(x.shape).astype(x.dtype)

    # Module config: MaxMinNorm(1.0, 0.0, eps=1e-5) -> normalize each sample to [0, 1].
    x = jax.random.normal(jax.random.PRNGKey(0), (2, 4, 16, 16), dtype=jnp.float32)
    y = max_min_norm(x, 1.0, 0.0, eps=eps)
    jax.block_until_ready(y)
    assert y.shape == x.shape and y.dtype == x.dtype
    assert bool(jnp.allclose(y, ref_fn(x), atol=1e-5, rtol=1e-5))

    # Multi-block fused path (grid > 1: pipelining + v7x megacore sharding).
    x_big = jax.random.normal(jax.random.PRNGKey(1), (64, 4, 16, 16), dtype=jnp.float32)
    y_big = max_min_norm(x_big, 1.0, 0.0, eps=eps)
    jax.block_until_ready(y_big)
    assert bool(jnp.allclose(y_big, ref_fn(x_big), atol=1e-5, rtol=1e-5))

    # Wide-row fallback (two-pass, lane-tiled) exercised via a tiny tile override.
    y_wide = max_min_norm(x, 1.0, 0.0, eps=eps, max_tile_bytes=4096)
    jax.block_until_ready(y_wide)
    assert bool(jnp.allclose(y_wide, ref_fn(x), atol=1e-5, rtol=1e-5))

    print("KERNEL_OK")
</pallas_src>

<mosaic_0001>
module attributes {stable_mosaic.version = 11 : i64} {
  func.func @_max_min_norm_kernel(%arg0: i32, %arg1: memref<2x1024xf32, #tpu.memory_space<vmem>>, %arg2: memref<2x1024xf32, #tpu.memory_space<vmem>>) attributes {dimension_semantics = [#tpu.dimension_semantics<parallel>], iteration_bounds = array<i64: 1>, scalar_prefetch = 0 : i64, scratch_operands = 0 : i64, tpu.core_type = #tpu.core_type<tc>, window_params = [{transform_indices = @transform_0, window_bounds = array<i64: 2, 1024>}, {transform_indices = @transform_1, window_bounds = array<i64: 2, 1024>}]} {
    %c0 = arith.constant 0 : index
    %c0_0 = arith.constant 0 : index
    %0 = vector.load %arg1[%c0, %c0_0] : memref<2x1024xf32, #tpu.memory_space<vmem>>, vector<2x1024xf32>
    %cst = arith.constant dense<0xFF800000> : vector<2xf32>
    %1 = vector.multi_reduction <maximumf>, %0, %cst [1] : vector<2x1024xf32> to vector<2xf32>
    %2 = vector.shape_cast %1 : vector<2xf32> to vector<2x1xf32>
    %cst_1 = arith.constant dense<0x7F800000> : vector<2xf32>
    %3 = vector.multi_reduction <minimumf>, %0, %cst_1 [1] : vector<2x1024xf32> to vector<2xf32>
    %4 = vector.shape_cast %3 : vector<2xf32> to vector<2x1xf32>
    %5 = arith.subf %2, %4 : vector<2x1xf32>
    %cst_2 = arith.constant 9.99999974E-6 : f32
    %6 = vector.broadcast %cst_2 : f32 to vector<2x1xf32>
    %7 = arith.addf %5, %6 : vector<2x1xf32>
    %cst_3 = arith.constant 1.000000e+00 : f32
    %8 = vector.broadcast %cst_3 : f32 to vector<2x1xf32>
    %9 = arith.divf %8, %7 : vector<2x1xf32>
    %10 = arith.mulf %4, %9 : vector<2x1xf32>
    %cst_4 = arith.constant 0.000000e+00 : f32
    %11 = vector.broadcast %cst_4 : f32 to vector<2x1xf32>
    %12 = arith.subf %11, %10 : vector<2x1xf32>
    %13 = vector.broadcast %9 : vector<2x1xf32> to vector<2x1024xf32>
    %14 = arith.mulf %0, %13 : vector<2x1024xf32>
    %15 = vector.broadcast %12 : vector<2x1xf32> to vector<2x1024xf32>
    %16 = arith.addf %14, %15 : vector<2x1024xf32>
    %c0_5 = arith.constant 0 : index
    %c0_6 = arith.constant 0 : index
    %17 = vector.load %arg2[%c0_5, %c0_6] : memref<2x1024xf32, #tpu.memory_space<vmem>>, vector<2x1024xf32>
    tpu.vector_store %arg2[%c0_5, %c0_6], %16 {strides = array<i32>} : memref<2x1024xf32, #tpu.memory_space<vmem>>, vector<2x1024xf32>,
    return
  }
  func.func @transform_0(%arg0: i32) -> (i32, i32) {
    %c0_i32 = arith.constant 0 : i32
    %c0_i32_0 = arith.constant 0 : i32
    return %arg0, %c0_i32 : i32, i32
  }
  func.func @transform_1(%arg0: i32) -> (i32, i32) {
    %c0_i32 = arith.constant 0 : i32
    %c0_i32_0 = arith.constant 0 : i32
    return %arg0, %c0_i32 : i32, i32
  }
}

</mosaic_0001>

<llo_original>
// kernel: tpu_custom_call.1
$region0: #{tpu_custom_call.1}
  #allocation0 [shape = 'u32[]', space=smem, size = 0x4, offset = 0x4, fixed_abs, tag = 'smem constant byte address 0x4 - core index']
  #allocation1 [shape = 'u32[72,128]{1,0:T(1,128)}', space=vmem, size = 0x9000, scoped, tag = 'internal scratch']
  %s0 = inlined_call_operand.hbm [shape: f32[2,1024], index: 0, kind: input, shape index: {}]
  %s1 = inlined_call_operand.hbm [shape: f32[2,1024], index: 1, kind: output, shape index: {}]
  %s2 = sld [smem:[#allocation0]]
  $region18: #{tpu_custom_call.1} parent=0
    _
  %s4 = ssub.s32 1, %s2
  %s5 = scalar_select 0, %s4, %s2
  $region1: #{tpu_custom_call.1} parent=0
    #allocation2 [shape = 'u8[8192]{0}', space=vmem, size = 0x2000, scoped, tag = 'input window, operand 0, single buffered']
    #allocation3 [shape = 's32[1]{0}', space=sflag, size = 0x4, scoped, tag = 'scoped memory for tpu_custom_call.1']
    #allocation4 [shape = 's32[1]{0}', space=sflag, size = 0x4, scoped, tag = 'scoped memory for tpu_custom_call.1']
    #allocation5 [shape = 'u8[8192]{0}', space=vmem, size = 0x2000, scoped, tag = 'output window, operand 0, single buffered']
    %6 = vsyncpa [#allocation3], 0
    %7 = vsyncpa [#allocation4], 0
    // Predicated region
    $region2: #{tpu_custom_call.1} parent=1 // pred_check
      _
    $region3: #{tpu_custom_call.1} parent=1 // pred_check_branch
      %9 = sbr.rel (0) target = $region5
    $region4: #{tpu_custom_call.1} parent=1 // pred_region
      %11 = vsyncadd [#allocation3], 0
      %s13 = sshll.u32 %s0, 4
      %s14 = int_to_ptr.hbm [resolvable:$true] %s13
      %s15 = sshll.u32 [#allocation2], 4
      %s16 = int_to_ptr.vmem [resolvable:$true] %s15
      %18 = dma.hbm_to_vmem [thread:$0]  %s14, 256, %s16, [#allocation3]
    $region5: #{tpu_custom_call.1} parent=1 // pred_fallthru
      _
    // Predicated region
    $region6: #{tpu_custom_call.1} parent=1 // pred_check
      _
    $region7: #{tpu_custom_call.1} parent=1 // pred_check_branch
      %20 = sbr.rel (0) target = $region9
    $region8: #{tpu_custom_call.1} parent=1 // pred_region
      %22 = dma.done [#allocation3], 256
    $region9: #{tpu_custom_call.1} parent=1 // pred_fallthru
      _
    %v23 = vld [vmem:[#allocation2] sm:$0xff]
    %v24 = vld [vmem:[#allocation2 + $0x8] sm:$0xff]
    %27 = vst [vmem:[#allocation1] ss:$4 sm:$0xff] %v23
    %s28 = scalar_lea.vmem [#allocation1], 32
    %29 = vst [vmem:[%s28] ss:$4 sm:$0xff] %v24
    %v30 = vld.sshfl [vmem:[#allocation1] sm:$0xff pattern:$0x73625140]
    %v31 = vld.sshfl [vmem:[#allocation1 + $0x8] sm:$0xff pattern:$0x73625140]
    %v32 = vld.sshfl [vmem:[#allocation1 + $0x10] sm:$0xff pattern:$0x73625140]
    %v33 = vld.sshfl [vmem:[#allocation1 + $0x18] sm:$0xff pattern:$0x73625140]
    %v34 = vld.sshfl [vmem:[#allocation1 + $0x20] sm:$0xff pattern:$0x73625140]
    %v35 = vld.sshfl [vmem:[#allocation1 + $0x28] sm:$0xff pattern:$0x73625140]
    %v36 = vld.sshfl [vmem:[#allocation1 + $0x30] sm:$0xff pattern:$0x73625140]
    %v37 = vld.sshfl [vmem:[#allocation1 + $0x38] sm:$0xff pattern:$0x73625140]
    %vm46 = vcmask 1041408
    %v47 = vsel %vm46, %v30, -inf
    %v48 = vsel %vm46, %v31, -inf
    %v49 = vsel %vm46, %v32, -inf
    %v50 = vsel %vm46, %v33, -inf
    %v51 = vsel %vm46, %v34, -inf
    %v52 = vmax.f32 %v47, %v51
    %v53 = vsel %vm46, %v35, -inf
    %v54 = vmax.f32 %v48, %v53
    %v55 = vsel %vm46, %v36, -inf
    %v56 = vmax.f32 %v49, %v55
    %v57 = vsel %vm46, %v37, -inf
    %v58 = vmax.f32 %v50, %v57
    %v59 = vmax.f32 %v52, %v54
    %v60 = vmax.f32 %v56, %v58
    %v61 = vmax.f32 %v59, %v60
    %62 = vmax.xlane.f32.xlu0 %v61
    %v63 = vpop.xlane.xlu0 %62
    %64 = vst [vmem:[#allocation1] ss:$4 sm:$0xff] %v23
    %s65 = scalar_lea.vmem [#allocation1], 32
    %66 = vst [vmem:[%s65] ss:$4 sm:$0xff] %v24
    %v67 = vld.sshfl [vmem:[#allocation1] sm:$0xff pattern:$0x73625140]
    %v68 = vld.sshfl [vmem:[#allocation1 + $0x8] sm:$0xff pattern:$0x73625140]
    %v69 = vld.sshfl [vmem:[#allocation1 + $0x10] sm:$0xff pattern:$0x73625140]
    %v70 = vld.sshfl [vmem:[#allocation1 + $0x18] sm:$0xff pattern:$0x73625140]
    %v71 = vld.sshfl [vmem:[#allocation1 + $0x20] sm:$0xff pattern:$0x73625140]
    %v72 = vld.sshfl [vmem:[#allocation1 + $0x28] sm:$0xff pattern:$0x73625140]
    %v73 = vld.sshfl [vmem:[#allocation1 + $0x30] sm:$0xff pattern:$0x73625140]
    %v74 = vld.sshfl [vmem:[#allocation1 + $0x38] sm:$0xff pattern:$0x73625140]
    %v83 = vsel %vm46, %v67, inf
    %v84 = vsel %vm46, %v68, inf
    %v85 = vsel %vm46, %v69, inf
    %v86 = vsel %vm46, %v70, inf
    %v87 = vsel %vm46, %v71, inf
    %v88 = vmin.f32 %v83, %v87
    %v89 = vsel %vm46, %v72, inf
    %v90 = vmin.f32 %v84, %v89
    %v91 = vsel %vm46, %v73, inf
    %v92 = vmin.f32 %v85, %v91
    %v93 = vsel %vm46, %v74, inf
    %v94 = vmin.f32 %v86, %v93
    %v95 = vmin.f32 %v88, %v90
    %v96 = vmin.f32 %v92, %v94
    %v97 = vmin.f32 %v95, %v96
    %98 = vmin.xlane.f32.xlu0 %v97
    %v99 = vpop.xlane.xlu0 %98
    %v100 = vsub.f32 %v63, %v99
    %v101 = vadd.f32 %v100, 1e-05
    %v102 = vrcp.pop %v101
    %v103 = vmul.f32 %v101, %v102
    %v104 = vsub.f32 1.0, %v103
    %v105 = vmul.f32 %v102, %v104
    %v106 = vadd.f32 %v102, %v105
    %vm107 = vweird.f32 %v101
    %vm108 = vweird.f32 %v102
    %vm109 = vmor %vm107, %vm108
    %v110 = vsel %vm109, %v102, %v106
    %v111 = vand.u32 2147483647, %v101
    %vm112 = vcmp.eq.f32.partialorder %v111, 8.507059e+37
    %v113 = vand.u32 %v101, 2147483648
    %v114 = vor.u32 1.1754944e-38, %v113
    %v115 = vsel %vm112, %v114, %v110
    %v116 = vmul.f32 1.0, %v115
    %v117 = vmul.f32 %v99, %v116
    %v118 = vsub.f32 0.0, %v117
    %v121 = vunpack.c.l.s4 269488144
    %v122 = vunpack.c.0.s8 %v121
    %v123 = vperm.slane %v116, %v122
    %v125 = vmul.f32 %v23, %v123
    %v126 = vmul.f32 %v24, %v123
    %v129 = vunpack.c.l.s4 269488144
    %v130 = vunpack.c.0.s8 %v129
    %v131 = vperm.slane %v118, %v130
    %v133 = vadd.f32 %v125, %v131
    %v134 = vadd.f32 %v126, %v131
    %135 = vst [vmem:[#allocation5] sm:$0xff] %v133
    %136 = vst [vmem:[#allocation5 + $0x8] sm:$0xff] %v134
    // Predicated region
    $region10: #{tpu_custom_call.1} parent=1 // pred_check
      _
    $region11: #{tpu_custom_call.1} parent=1 // pred_check_branch
      %138 = sbr.rel (0) target = $region13
    $region12: #{tpu_custom_call.1} parent=1 // pred_region
      %140 = vsyncadd [#allocation4], 0
      %s142 = sshll.u32 [#allocation5], 4
      %s143 = int_to_ptr.vmem [resolvable:$true] %s142
      %s144 = sshll.u32 %s1, 4
      %s145 = int_to_ptr.hbm [resolvable:$true] %s144
      %147 = dma.vmem_to_hbm [thread:$0]  %s143, 256, %s145, [#allocation4]
    $region13: #{tpu_custom_call.1} parent=1 // pred_fallthru
      _
    // Predicated region
    $region14: #{tpu_custom_call.1} parent=1 // pred_check
      _
    $region15: #{tpu_custom_call.1} parent=1 // pred_check_branch
      %149 = sbr.rel (0) target = $region17
    $region16: #{tpu_custom_call.1} parent=1 // pred_region
      %151 = dma.done [#allocation4], 256
    $region17: #{tpu_custom_call.1} parent=1 // pred_fallthru
      _
    %152 = vsyncpa [#allocation3], 1
    %153 = vsyncpa [#allocation4], 1

</llo_original>
